<compile_context>
chip_gen: v5e
topology: v5e:2x2
jax: 0.10.0
libtpu: 0.0.40
codegen_flags: <defaults>
</compile_context>

<pallas_src>
import functools
import math

import jax
import jax.numpy as jnp
import numpy as np
from jax import lax
from jax.experimental import pallas as pl
from jax.experimental.pallas import tpu as pltpu

LN_EPS = 1e-5


def _msa_kernel(x_ref, wqkv_ref, bqkv_ref, woT_ref, vecs_ref, o_ref,
                qkv16_ref, *, num_heads: int, seq_len: int, block_batch: int):
    """Fused LayerNorm + multi-head self-attention for one row block.

    x_ref:     (R, E)   rows of `block_batch` complete batch elements (R=bb*S).
    wqkv_ref:  (E, 3E)  bf16 fused QKV weight (pre-transposed, Q pre-scaled).
    bqkv_ref:  (1, 3E)  f32 fused QKV bias (Q bias pre-scaled).
    woT_ref:   (E, E)   bf16 pre-transposed output-projection weight.
    vecs_ref:  (3, E)   f32 rows = [ln_gamma, ln_beta, out_bias].
    o_ref:     (R, E)   output rows.
    qkv16_ref: (R, 3E)  bf16 VMEM scratch holding the QKV matmul operands.
    """
    R, E = x_ref.shape
    hd = E // num_heads
    S = seq_len

    vecs = vecs_ref[...]                       # (3, E) f32
    gamma = vecs[0:1, :]
    beta = vecs[1:2, :]
    bo = vecs[2:3, :]

    # ---- LayerNorm over the embedding dim (f32 on VPU) -------------------
    x = x_ref[...].astype(jnp.float32)
    mean = jnp.mean(x, axis=-1, keepdims=True)
    xc = x - mean
    var = jnp.mean(xc * xc, axis=-1, keepdims=True)
    xn = (xc * lax.rsqrt(var + LN_EPS)) * gamma + beta        # (R, E) f32

    # ---- Fused QKV projection: bf16 operands, f32 accumulation -----------
    # 1/sqrt(hd) is already folded into the Q weight/bias slabs.
    qkv = jnp.dot(xn.astype(jnp.bfloat16), wqkv_ref[...],
                  preferred_element_type=jnp.float32) + bqkv_ref[...]
    qkv16_ref[...] = qkv.astype(jnp.bfloat16)                 # matmul operands
    woT = woT_ref[...]                                        # (E, E) bf16

    qk_dims = (((1,), (1,)), ((), ()))   # contract last dims: q @ k^T, no kh.T

    # TODO(synk): for long sequences switch to flash-style online-softmax KV
    # tiling instead of a full (S, S) f32 score tile per head.
    @pl.loop(0, block_batch)
    def _(b):
        r0 = pl.multiple_of(b * S, S)
        blk = qkv16_ref[pl.ds(r0, S), :]                      # (S, 3E) bf16
        acc = jnp.zeros((S, E), jnp.float32)
        for h in range(num_heads):                            # static lane offsets
            c0 = h * hd
            qh = blk[:, c0:c0 + hd]
            kh = blk[:, E + c0:E + c0 + hd]
            vh = blk[:, 2 * E + c0:2 * E + c0 + hd]
            s = lax.dot_general(qh, kh, qk_dims,
                                preferred_element_type=jnp.float32)   # (S, S)
            s = s - jnp.max(s, axis=-1, keepdims=True)
            e = jnp.exp(s)
            p = e * pl.reciprocal(jnp.sum(e, axis=-1, keepdims=True),
                                  approx=True)
            ctx = jnp.dot(p.astype(jnp.bfloat16), vh,
                          preferred_element_type=jnp.float32)         # (S, hd)
            # Fold this head straight into the output projection: lane-dense
            # (S, E) accumulate, no masked sub-128-lane ctx stores.
            acc = acc + jnp.dot(ctx.astype(jnp.bfloat16),
                                woT[c0:c0 + hd, :],
                                preferred_element_type=jnp.float32)
        o_ref[pl.ds(r0, S), :] = (acc + bo).astype(o_ref.dtype)


def _vmem_capacity_bytes():
    try:
        info = pltpu.get_tpu_info()
        return int(getattr(info, "vmem_capacity_bytes", 64 << 20))
    except Exception:
        return 64 << 20     # conservative (v7x per-TC VMEM)


def _working_set_bytes(rows, S, E):
    # double-buffered weights (bf16 W's, f32 biases/vecs)
    weight_bytes = 2 * (E * 3 * E * 2 + 3 * E * 4 + E * E * 2 + 3 * E * 4)
    # x/out blocks (2x-buffered f32) + f32 qkv + bf16 qkv scratch + LN temps
    per_row = 48 * E
    extra = S * S * 4 + S * E * 12        # scores + per-head ctx/acc temps
    return weight_bytes + rows * per_row + extra


def _pick_block_batch(B, S, E, budget):
    """Largest batch-per-step that fits `budget`, preferring >= 2 grid steps."""
    if S % 8 != 0:
        # TODO(synk): pad S to a multiple of 8 (with masking) instead of
        # forcing the whole batch into a single block.
        return B
    legal = [d for d in range(1, B + 1)
             if B % d == 0 and (d == B or (S * d) % 8 == 0)]
    fitting = [d for d in legal if _working_set_bytes(d * S, S, E) <= budget]
    multi = [d for d in fitting if B // d >= 2]   # keep both v7x TCs busy
    if multi:
        return max(multi)
    if fitting:
        return max(fitting)
    return min(legal)


def msa_block(x, params, num_heads):
    """x: (B, S, E) float32. params: dict of jnp arrays (PyTorch layout)."""
    B, S, E = x.shape
    assert E % num_heads == 0
    hd = E // num_heads
    scale = 1.0 / math.sqrt(hd)

    # Fuse / pre-transpose / pre-scale weights so the kernel does x @ W_T + b
    # with bf16 matmul operands.  The 1/sqrt(hd) scale must hit both Wq and bq.
    wqkvT = jnp.concatenate(
        [params["wq"].T * scale, params["wk"].T, params["wv"].T],
        axis=1).astype(jnp.bfloat16)                                 # (E, 3E)
    bqkv = jnp.concatenate(
        [params["bq"] * scale, params["bk"], params["bv"]]
    ).reshape(1, 3 * E).astype(jnp.float32)                          # (1, 3E)
    woT = params["wo"].T.astype(jnp.bfloat16)                        # (E, E)
    vecs = jnp.stack([params["gamma"], params["beta"], params["bo"]],
                     axis=0).astype(jnp.float32)                     # (3, E)

    cap = _vmem_capacity_bytes()
    bb = _pick_block_batch(B, S, E, budget=cap // 2)
    R = bb * S
    grid = (B // bb,)

    needed = _working_set_bytes(R, S, E) + (2 << 20)
    vmem_limit = int(min(max(needed, 16 << 20), int(cap * 0.9)))

    xf = x.reshape(B * S, E)
    row_spec = pl.BlockSpec((R, E), lambda i: (i, 0))

    # TODO(synk): single-buffer the constant-index weight operands with
    # pipeline_mode=pl.Buffered(1) once verified on the target jax version.
    out = pl.pallas_call(
        functools.partial(_msa_kernel, num_heads=num_heads, seq_len=S,
                          block_batch=bb),
        out_shape=jax.ShapeDtypeStruct((B * S, E), x.dtype),
        grid_spec=pltpu.PrefetchScalarGridSpec(
            num_scalar_prefetch=0,
            grid=grid,
            in_specs=[
                row_spec,                                       # x rows
                pl.BlockSpec((E, 3 * E), lambda i: (0, 0)),     # fused QKV W^T
                pl.BlockSpec((1, 3 * E), lambda i: (0, 0)),     # fused QKV bias
                pl.BlockSpec((E, E), lambda i: (0, 0)),         # Wo^T
                pl.BlockSpec((3, E), lambda i: (0, 0)),         # gamma/beta/bo
            ],
            out_specs=row_spec,
            scratch_shapes=[pltpu.VMEM((R, 3 * E), jnp.bfloat16)],  # bf16 QKV
        ),
        compiler_params=pltpu.CompilerParams(
            dimension_semantics=("parallel",),
            vmem_limit_bytes=vmem_limit),
    )(xf, wqkvT, bqkv, woT, vecs)
    return out.reshape(B, S, E)


def ref_forward(x, params, num_heads):
    """Pure-JAX reference matching nn.LayerNorm + nn.MultiheadAttention."""
    E = x.shape[-1]
    hd = E // num_heads
    mean = x.mean(-1, keepdims=True)
    var = ((x - mean) ** 2).mean(-1, keepdims=True)
    xn = (x - mean) / jnp.sqrt(var + LN_EPS) * params["gamma"] + params["beta"]

    q = xn @ params["wq"].T + params["bq"]
    k = xn @ params["wk"].T + params["bk"]
    v = xn @ params["wv"].T + params["bv"]

    B, S, _ = x.shape
    q = q.reshape(B, S, num_heads, hd).transpose(0, 2, 1, 3) / math.sqrt(hd)
    k = k.reshape(B, S, num_heads, hd).transpose(0, 2, 1, 3)
    v = v.reshape(B, S, num_heads, hd).transpose(0, 2, 1, 3)
    scores = jnp.einsum("bhqd,bhkd->bhqk", q, k)
    probs = jax.nn.softmax(scores, axis=-1)
    out = jnp.einsum("bhqk,bhkd->bhqd", probs, v)
    out = out.transpose(0, 2, 1, 3).reshape(B, S, E)
    return out @ params["wo"].T + params["bo"]


if __name__ == "__main__":
    B, S, E, H = 2, 8, 32, 4   # small shapes consistent with the module

    key = jax.random.PRNGKey(0)
    keys = jax.random.split(key, 12)
    std = 0.02
    params = {
        "gamma": 1.0 + std * jax.random.normal(keys[0], (E,), jnp.float32),
        "beta":  std * jax.random.normal(keys[1], (E,), jnp.float32),
        "wq": std * jax.random.normal(keys[2], (E, E), jnp.float32),
        "wk": std * jax.random.normal(keys[3], (E, E), jnp.float32),
        "wv": std * jax.random.normal(keys[4], (E, E), jnp.float32),
        "bq": std * jax.random.normal(keys[5], (E,), jnp.float32),
        "bk": std * jax.random.normal(keys[6], (E,), jnp.float32),
        "bv": std * jax.random.normal(keys[7], (E,), jnp.float32),
        "wo": std * jax.random.normal(keys[8], (E, E), jnp.float32),
        "bo": std * jax.random.normal(keys[9], (E,), jnp.float32),
    }
    x = jax.random.normal(keys[10], (B, S, E), jnp.float32)

    out = jax.block_until_ready(msa_block(x, params, H))
    ref = jax.block_until_ready(ref_forward(x, params, H))
    # bf16 matmul operands (f32 accumulation) -> slightly looser tolerance.
    np.testing.assert_allclose(np.asarray(out), np.asarray(ref),
                               rtol=2e-2, atol=1e-3)
    print("KERNEL_OK")
</pallas_src>

<mosaic_0001>
module attributes {stable_mosaic.version = 11 : i64} {
  func.func @_msa_kernel(%arg0: i32, %arg1: memref<8x32xf32, #tpu.memory_space<vmem>>, %arg2: memref<32x96xbf16, #tpu.memory_space<vmem>>, %arg3: memref<1x96xf32, #tpu.memory_space<vmem>>, %arg4: memref<32x32xbf16, #tpu.memory_space<vmem>>, %arg5: memref<3x32xf32, #tpu.memory_space<vmem>>, %arg6: memref<8x32xf32, #tpu.memory_space<vmem>>, %arg7: memref<8x96xbf16, #tpu.memory_space<vmem>>) attributes {dimension_semantics = [#tpu.dimension_semantics<parallel>], iteration_bounds = array<i64: 2>, scalar_prefetch = 0 : i64, scratch_operands = 1 : i64, tpu.core_type = #tpu.core_type<tc>, window_params = [{transform_indices = @transform_0, window_bounds = array<i64: 8, 32>}, {pipeline_mode = #tpu.pipeline_mode<synchronous>, transform_indices = @transform_1, window_bounds = array<i64: 32, 96>}, {pipeline_mode = #tpu.pipeline_mode<synchronous>, transform_indices = @transform_2, window_bounds = array<i64: 1, 96>}, {pipeline_mode = #tpu.pipeline_mode<synchronous>, transform_indices = @transform_3, window_bounds = array<i64: 32, 32>}, {pipeline_mode = #tpu.pipeline_mode<synchronous>, transform_indices = @transform_4, window_bounds = array<i64: 3, 32>}, {transform_indices = @transform_5, window_bounds = array<i64: 8, 32>}]} {
    %c0 = arith.constant 0 : index
    %c0_0 = arith.constant 0 : index
    %0 = vector.load %arg5[%c0, %c0_0] : memref<3x32xf32, #tpu.memory_space<vmem>>, vector<3x32xf32>
    %1 = vector.extract_strided_slice %0 {offsets = [0, 0], sizes = [1, 32], strides = [1, 1]} : vector<3x32xf32> to vector<1x32xf32>
    %2 = vector.extract_strided_slice %0 {offsets = [1, 0], sizes = [1, 32], strides = [1, 1]} : vector<3x32xf32> to vector<1x32xf32>
    %3 = vector.extract_strided_slice %0 {offsets = [2, 0], sizes = [1, 32], strides = [1, 1]} : vector<3x32xf32> to vector<1x32xf32>
    %c0_1 = arith.constant 0 : index
    %c0_2 = arith.constant 0 : index
    %4 = vector.load %arg1[%c0_1, %c0_2] : memref<8x32xf32, #tpu.memory_space<vmem>>, vector<8x32xf32>
    %cst = arith.constant dense<0.000000e+00> : vector<8xf32>
    %5 = vector.multi_reduction <add>, %4, %cst [1] : vector<8x32xf32> to vector<8xf32>
    %6 = vector.shape_cast %5 : vector<8xf32> to vector<8x1xf32>
    %cst_3 = arith.constant 3.200000e+01 : f32
    %7 = vector.broadcast %cst_3 : f32 to vector<8x1xf32>
    %8 = arith.divf %6, %7 : vector<8x1xf32>
    %9 = vector.broadcast %8 : vector<8x1xf32> to vector<8x32xf32>
    %10 = arith.subf %4, %9 : vector<8x32xf32>
    %11 = arith.mulf %10, %10 : vector<8x32xf32>
    %cst_4 = arith.constant dense<0.000000e+00> : vector<8xf32>
    %12 = vector.multi_reduction <add>, %11, %cst_4 [1] : vector<8x32xf32> to vector<8xf32>
    %13 = vector.shape_cast %12 : vector<8xf32> to vector<8x1xf32>
    %cst_5 = arith.constant 3.200000e+01 : f32
    %14 = vector.broadcast %cst_5 : f32 to vector<8x1xf32>
    %15 = arith.divf %13, %14 : vector<8x1xf32>
    %cst_6 = arith.constant 9.99999974E-6 : f32
    %16 = vector.broadcast %cst_6 : f32 to vector<8x1xf32>
    %17 = arith.addf %15, %16 : vector<8x1xf32>
    %18 = math.rsqrt %17 : vector<8x1xf32>
    %19 = vector.broadcast %18 : vector<8x1xf32> to vector<8x32xf32>
    %20 = arith.mulf %10, %19 : vector<8x32xf32>
    %21 = vector.broadcast %1 : vector<1x32xf32> to vector<8x32xf32>
    %22 = arith.mulf %20, %21 : vector<8x32xf32>
    %23 = vector.broadcast %2 : vector<1x32xf32> to vector<8x32xf32>
    %24 = arith.addf %22, %23 : vector<8x32xf32>
    %25 = arith.truncf %24 : vector<8x32xf32> to vector<8x32xbf16>
    %c0_7 = arith.constant 0 : index
    %c0_8 = arith.constant 0 : index
    %26 = vector.load %arg2[%c0_7, %c0_8] : memref<32x96xbf16, #tpu.memory_space<vmem>>, vector<32x96xbf16>
    %cst_9 = arith.constant dense<0.000000e+00> : vector<8x96xf32>
    %27 = tpu.matmul %25, %26, %cst_9 {dimension_numbers = #tpu.dot_dimension_numbers<[1], [0], [0], [1], [0, 0, 1, 1], [], []>} : vector<8x32xbf16>, vector<32x96xbf16>, vector<8x96xf32> -> vector<8x96xf32>
    %c0_10 = arith.constant 0 : index
    %c0_11 = arith.constant 0 : index
    %28 = vector.load %arg3[%c0_10, %c0_11] : memref<1x96xf32, #tpu.memory_space<vmem>>, vector<1x96xf32>
    %29 = vector.broadcast %28 : vector<1x96xf32> to vector<8x96xf32>
    %30 = arith.addf %27, %29 : vector<8x96xf32>
    %31 = arith.truncf %30 : vector<8x96xf32> to vector<8x96xbf16>
    %c0_12 = arith.constant 0 : index
    %c0_13 = arith.constant 0 : index
    %32 = vector.load %arg7[%c0_12, %c0_13] : memref<8x96xbf16, #tpu.memory_space<vmem>>, vector<8x96xbf16>
    tpu.vector_store %arg7[%c0_12, %c0_13], %31 {strides = array<i32>} : memref<8x96xbf16, #tpu.memory_space<vmem>>, vector<8x96xbf16>,
    %c0_14 = arith.constant 0 : index
    %c0_15 = arith.constant 0 : index
    %33 = vector.load %arg4[%c0_14, %c0_15] : memref<32x32xbf16, #tpu.memory_space<vmem>>, vector<32x32xbf16>
    %c0_i32 = arith.constant 0 : i32
    %c1_i32 = arith.constant 1 : i32
    %34 = arith.muli %c0_i32, %c1_i32 : i32
    %c0_i32_16 = arith.constant 0 : i32
    %35 = arith.addi %c0_i32_16, %34 : i32
    %c8_i32 = arith.constant 8 : i32
    %36 = arith.muli %35, %c8_i32 : i32
    %37 = tpu.assume_multiple %36, 8 : i32
    %38 = arith.index_cast %37 : i32 to index
    %c0_17 = arith.constant 0 : index
    %39 = vector.load %arg7[%38, %c0_17] : memref<8x96xbf16, #tpu.memory_space<vmem>>, vector<8x96xbf16>
    %cst_18 = arith.constant 0.000000e+00 : f32
    %40 = vector.broadcast %cst_18 : f32 to vector<8x32xf32>
    %41 = vector.extract_strided_slice %39 {offsets = [0, 0], sizes = [8, 8], strides = [1, 1]} : vector<8x96xbf16> to vector<8x8xbf16>
    %42 = vector.extract_strided_slice %39 {offsets = [0, 32], sizes = [8, 8], strides = [1, 1]} : vector<8x96xbf16> to vector<8x8xbf16>
    %43 = vector.extract_strided_slice %39 {offsets = [0, 64], sizes = [8, 8], strides = [1, 1]} : vector<8x96xbf16> to vector<8x8xbf16>
    %cst_19 = arith.constant dense<0.000000e+00> : vector<8x8xf32>
    %44 = tpu.matmul %41, %42, %cst_19 {dimension_numbers = #tpu.dot_dimension_numbers<[1], [1], [0], [0], [0, 0, 1, 0], [], []>} : vector<8x8xbf16>, vector<8x8xbf16>, vector<8x8xf32> -> vector<8x8xf32>
    %cst_20 = arith.constant dense<0xFF800000> : vector<8xf32>
    %45 = vector.multi_reduction <maximumf>, %44, %cst_20 [1] : vector<8x8xf32> to vector<8xf32>
    %46 = vector.shape_cast %45 : vector<8xf32> to vector<8x1xf32>
    %47 = vector.broadcast %46 : vector<8x1xf32> to vector<8x8xf32>
    %48 = arith.subf %44, %47 : vector<8x8xf32>
    %49 = math.exp %48 : vector<8x8xf32>
    %cst_21 = arith.constant dense<0.000000e+00> : vector<8xf32>
    %50 = vector.multi_reduction <add>, %49, %cst_21 [1] : vector<8x8xf32> to vector<8xf32>
    %51 = vector.shape_cast %50 : vector<8xf32> to vector<8x1xf32>
    %52 = tpu.reciprocal %51 {approx = true} : vector<8x1xf32> -> vector<8x1xf32>
    %53 = vector.broadcast %52 : vector<8x1xf32> to vector<8x8xf32>
    %54 = arith.mulf %49, %53 : vector<8x8xf32>
    %55 = arith.truncf %54 : vector<8x8xf32> to vector<8x8xbf16>
    %cst_22 = arith.constant dense<0.000000e+00> : vector<8x8xf32>
    %56 = tpu.matmul %55, %43, %cst_22 {dimension_numbers = #tpu.dot_dimension_numbers<[1], [0], [0], [1], [0, 0, 1, 1], [], []>} : vector<8x8xbf16>, vector<8x8xbf16>, vector<8x8xf32> -> vector<8x8xf32>
    %57 = arith.truncf %56 : vector<8x8xf32> to vector<8x8xbf16>
    %58 = vector.extract_strided_slice %33 {offsets = [0, 0], sizes = [8, 32], strides = [1, 1]} : vector<32x32xbf16> to vector<8x32xbf16>
    %cst_23 = arith.constant dense<0.000000e+00> : vector<8x32xf32>
    %59 = tpu.matmul %57, %58, %cst_23 {dimension_numbers = #tpu.dot_dimension_numbers<[1], [0], [0], [1], [0, 0, 1, 1], [], []>} : vector<8x8xbf16>, vector<8x32xbf16>, vector<8x32xf32> -> vector<8x32xf32>
    %60 = arith.addf %40, %59 : vector<8x32xf32>
    %61 = vector.extract_strided_slice %39 {offsets = [0, 8], sizes = [8, 8], strides = [1, 1]} : vector<8x96xbf16> to vector<8x8xbf16>
    %62 = vector.extract_strided_slice %39 {offsets = [0, 40], sizes = [8, 8], strides = [1, 1]} : vector<8x96xbf16> to vector<8x8xbf16>
    %63 = vector.extract_strided_slice %39 {offsets = [0, 72], sizes = [8, 8], strides = [1, 1]} : vector<8x96xbf16> to vector<8x8xbf16>
    %cst_24 = arith.constant dense<0.000000e+00> : vector<8x8xf32>
    %64 = tpu.matmul %61, %62, %cst_24 {dimension_numbers = #tpu.dot_dimension_numbers<[1], [1], [0], [0], [0, 0, 1, 0], [], []>} : vector<8x8xbf16>, vector<8x8xbf16>, vector<8x8xf32> -> vector<8x8xf32>
    %cst_25 = arith.constant dense<0xFF800000> : vector<8xf32>
    %65 = vector.multi_reduction <maximumf>, %64, %cst_25 [1] : vector<8x8xf32> to vector<8xf32>
    %66 = vector.shape_cast %65 : vector<8xf32> to vector<8x1xf32>
    %67 = vector.broadcast %66 : vector<8x1xf32> to vector<8x8xf32>
    %68 = arith.subf %64, %67 : vector<8x8xf32>
    %69 = math.exp %68 : vector<8x8xf32>
    %cst_26 = arith.constant dense<0.000000e+00> : vector<8xf32>
    %70 = vector.multi_reduction <add>, %69, %cst_26 [1] : vector<8x8xf32> to vector<8xf32>
    %71 = vector.shape_cast %70 : vector<8xf32> to vector<8x1xf32>
    %72 = tpu.reciprocal %71 {approx = true} : vector<8x1xf32> -> vector<8x1xf32>
    %73 = vector.broadcast %72 : vector<8x1xf32> to vector<8x8xf32>
    %74 = arith.mulf %69, %73 : vector<8x8xf32>
    %75 = arith.truncf %74 : vector<8x8xf32> to vector<8x8xbf16>
    %cst_27 = arith.constant dense<0.000000e+00> : vector<8x8xf32>
    %76 = tpu.matmul %75, %63, %cst_27 {dimension_numbers = #tpu.dot_dimension_numbers<[1], [0], [0], [1], [0, 0, 1, 1], [], []>} : vector<8x8xbf16>, vector<8x8xbf16>, vector<8x8xf32> -> vector<8x8xf32>
    %77 = arith.truncf %76 : vector<8x8xf32> to vector<8x8xbf16>
    %78 = vector.extract_strided_slice %33 {offsets = [8, 0], sizes = [8, 32], strides = [1, 1]} : vector<32x32xbf16> to vector<8x32xbf16>
    %cst_28 = arith.constant dense<0.000000e+00> : vector<8x32xf32>
    %79 = tpu.matmul %77, %78, %cst_28 {dimension_numbers = #tpu.dot_dimension_numbers<[1], [0], [0], [1], [0, 0, 1, 1], [], []>} : vector<8x8xbf16>, vector<8x32xbf16>, vector<8x32xf32> -> vector<8x32xf32>
    %80 = arith.addf %60, %79 : vector<8x32xf32>
    %81 = vector.extract_strided_slice %39 {offsets = [0, 16], sizes = [8, 8], strides = [1, 1]} : vector<8x96xbf16> to vector<8x8xbf16>
    %82 = vector.extract_strided_slice %39 {offsets = [0, 48], sizes = [8, 8], strides = [1, 1]} : vector<8x96xbf16> to vector<8x8xbf16>
    %83 = vector.extract_strided_slice %39 {offsets = [0, 80], sizes = [8, 8], strides = [1, 1]} : vector<8x96xbf16> to vector<8x8xbf16>
    %cst_29 = arith.constant dense<0.000000e+00> : vector<8x8xf32>
    %84 = tpu.matmul %81, %82, %cst_29 {dimension_numbers = #tpu.dot_dimension_numbers<[1], [1], [0], [0], [0, 0, 1, 0], [], []>} : vector<8x8xbf16>, vector<8x8xbf16>, vector<8x8xf32> -> vector<8x8xf32>
    %cst_30 = arith.constant dense<0xFF800000> : vector<8xf32>
    %85 = vector.multi_reduction <maximumf>, %84, %cst_30 [1] : vector<8x8xf32> to vector<8xf32>
    %86 = vector.shape_cast %85 : vector<8xf32> to vector<8x1xf32>
    %87 = vector.broadcast %86 : vector<8x1xf32> to vector<8x8xf32>
    %88 = arith.subf %84, %87 : vector<8x8xf32>
    %89 = math.exp %88 : vector<8x8xf32>
    %cst_31 = arith.constant dense<0.000000e+00> : vector<8xf32>
    %90 = vector.multi_reduction <add>, %89, %cst_31 [1] : vector<8x8xf32> to vector<8xf32>
    %91 = vector.shape_cast %90 : vector<8xf32> to vector<8x1xf32>
    %92 = tpu.reciprocal %91 {approx = true} : vector<8x1xf32> -> vector<8x1xf32>
    %93 = vector.broadcast %92 : vector<8x1xf32> to vector<8x8xf32>
    %94 = arith.mulf %89, %93 : vector<8x8xf32>
    %95 = arith.truncf %94 : vector<8x8xf32> to vector<8x8xbf16>
    %cst_32 = arith.constant dense<0.000000e+00> : vector<8x8xf32>
    %96 = tpu.matmul %95, %83, %cst_32 {dimension_numbers = #tpu.dot_dimension_numbers<[1], [0], [0], [1], [0, 0, 1, 1], [], []>} : vector<8x8xbf16>, vector<8x8xbf16>, vector<8x8xf32> -> vector<8x8xf32>
    %97 = arith.truncf %96 : vector<8x8xf32> to vector<8x8xbf16>
    %98 = vector.extract_strided_slice %33 {offsets = [16, 0], sizes = [8, 32], strides = [1, 1]} : vector<32x32xbf16> to vector<8x32xbf16>
    %cst_33 = arith.constant dense<0.000000e+00> : vector<8x32xf32>
    %99 = tpu.matmul %97, %98, %cst_33 {dimension_numbers = #tpu.dot_dimension_numbers<[1], [0], [0], [1], [0, 0, 1, 1], [], []>} : vector<8x8xbf16>, vector<8x32xbf16>, vector<8x32xf32> -> vector<8x32xf32>
    %100 = arith.addf %80, %99 : vector<8x32xf32>
    %101 = vector.extract_strided_slice %39 {offsets = [0, 24], sizes = [8, 8], strides = [1, 1]} : vector<8x96xbf16> to vector<8x8xbf16>
    %102 = vector.extract_strided_slice %39 {offsets = [0, 56], sizes = [8, 8], strides = [1, 1]} : vector<8x96xbf16> to vector<8x8xbf16>
    %103 = vector.extract_strided_slice %39 {offsets = [0, 88], sizes = [8, 8], strides = [1, 1]} : vector<8x96xbf16> to vector<8x8xbf16>
    %cst_34 = arith.constant dense<0.000000e+00> : vector<8x8xf32>
    %104 = tpu.matmul %101, %102, %cst_34 {dimension_numbers = #tpu.dot_dimension_numbers<[1], [1], [0], [0], [0, 0, 1, 0], [], []>} : vector<8x8xbf16>, vector<8x8xbf16>, vector<8x8xf32> -> vector<8x8xf32>
    %cst_35 = arith.constant dense<0xFF800000> : vector<8xf32>
    %105 = vector.multi_reduction <maximumf>, %104, %cst_35 [1] : vector<8x8xf32> to vector<8xf32>
    %106 = vector.shape_cast %105 : vector<8xf32> to vector<8x1xf32>
    %107 = vector.broadcast %106 : vector<8x1xf32> to vector<8x8xf32>
    %108 = arith.subf %104, %107 : vector<8x8xf32>
    %109 = math.exp %108 : vector<8x8xf32>
    %cst_36 = arith.constant dense<0.000000e+00> : vector<8xf32>
    %110 = vector.multi_reduction <add>, %109, %cst_36 [1] : vector<8x8xf32> to vector<8xf32>
    %111 = vector.shape_cast %110 : vector<8xf32> to vector<8x1xf32>
    %112 = tpu.reciprocal %111 {approx = true} : vector<8x1xf32> -> vector<8x1xf32>
    %113 = vector.broadcast %112 : vector<8x1xf32> to vector<8x8xf32>
    %114 = arith.mulf %109, %113 : vector<8x8xf32>
    %115 = arith.truncf %114 : vector<8x8xf32> to vector<8x8xbf16>
    %cst_37 = arith.constant dense<0.000000e+00> : vector<8x8xf32>
    %116 = tpu.matmul %115, %103, %cst_37 {dimension_numbers = #tpu.dot_dimension_numbers<[1], [0], [0], [1], [0, 0, 1, 1], [], []>} : vector<8x8xbf16>, vector<8x8xbf16>, vector<8x8xf32> -> vector<8x8xf32>
    %117 = arith.truncf %116 : vector<8x8xf32> to vector<8x8xbf16>
    %118 = vector.extract_strided_slice %33 {offsets = [24, 0], sizes = [8, 32], strides = [1, 1]} : vector<32x32xbf16> to vector<8x32xbf16>
    %cst_38 = arith.constant dense<0.000000e+00> : vector<8x32xf32>
    %119 = tpu.matmul %117, %118, %cst_38 {dimension_numbers = #tpu.dot_dimension_numbers<[1], [0], [0], [1], [0, 0, 1, 1], [], []>} : vector<8x8xbf16>, vector<8x32xbf16>, vector<8x32xf32> -> vector<8x32xf32>
    %120 = arith.addf %100, %119 : vector<8x32xf32>
    %121 = vector.broadcast %3 : vector<1x32xf32> to vector<8x32xf32>
    %122 = arith.addf %120, %121 : vector<8x32xf32>
    %123 = arith.index_cast %37 : i32 to index
    %c0_39 = arith.constant 0 : index
    %124 = vector.load %arg6[%123, %c0_39] : memref<8x32xf32, #tpu.memory_space<vmem>>, vector<8x32xf32>
    tpu.vector_store %arg6[%123, %c0_39], %122 {strides = array<i32>} : memref<8x32xf32, #tpu.memory_space<vmem>>, vector<8x32xf32>,
    %c1_i32_40 = arith.constant 1 : i32
    return
  }
  func.func @transform_0(%arg0: i32) -> (i32, i32) {
    %c0_i32 = arith.constant 0 : i32
    %c0_i32_0 = arith.constant 0 : i32
    return %arg0, %c0_i32 : i32, i32
  }
  func.func @transform_1(%arg0: i32) -> (i32, i32) {
    %c0_i32 = arith.constant 0 : i32
    %c0_i32_0 = arith.constant 0 : i32
    %c0_i32_1 = arith.constant 0 : i32
    return %c0_i32, %c0_i32_0 : i32, i32
  }
  func.func @transform_2(%arg0: i32) -> (i32, i32) {
    %c0_i32 = arith.constant 0 : i32
    %c0_i32_0 = arith.constant 0 : i32
    %c0_i32_1 = arith.constant 0 : i32
    return %c0_i32, %c0_i32_0 : i32, i32
  }
  func.func @transform_3(%arg0: i32) -> (i32, i32) {
    %c0_i32 = arith.constant 0 : i32
    %c0_i32_0 = arith.constant 0 : i32
    %c0_i32_1 = arith.constant 0 : i32
    return %c0_i32, %c0_i32_0 : i32, i32
  }
  func.func @transform_4(%arg0: i32) -> (i32, i32) {
    %c0_i32 = arith.constant 0 : i32
    %c0_i32_0 = arith.constant 0 : i32
    %c0_i32_1 = arith.constant 0 : i32
    return %c0_i32, %c0_i32_0 : i32, i32
  }
  func.func @transform_5(%arg0: i32) -> (i32, i32) {
    %c0_i32 = arith.constant 0 : i32
    %c0_i32_0 = arith.constant 0 : i32
    return %arg0, %c0_i32 : i32, i32
  }
}

</mosaic_0001>

<llo_original>
// kernel: tpu_custom_call.1
$region0: #{tpu_custom_call.1}
  #allocation0 [shape = 'u32[]', space=smem, size = 0x4, offset = 0x4, fixed_abs, tag = 'smem constant byte address 0x4 - core index']
  #allocation1 [shape = 'u32[72,128]{1,0:T(1,128)}', space=vmem, size = 0x9000, scoped, tag = 'internal scratch']
  #allocation2 [shape = 'bf16[8,96]{1,0:T(8,128)(2,1)}', space=vmem, size = 0x800, scoped, tag = 'scratch operand']
  %s0 = inlined_call_operand.hbm [shape: f32[16,32], index: 0, kind: input, shape index: {}]
  %s1 = inlined_call_operand.hbm [shape: bf16[32,96], index: 1, kind: input, shape index: {}]
  %s2 = inlined_call_operand.vmem [shape: f32[1,96], index: 2, kind: input, shape index: {}]
  %s3 = inlined_call_operand.hbm [shape: bf16[32,32], index: 3, kind: input, shape index: {}]
  %s4 = inlined_call_operand.hbm [shape: f32[3,32], index: 4, kind: input, shape index: {}]
  %s5 = inlined_call_operand.hbm [shape: f32[16,32], index: 5, kind: output, shape index: {}]
  %s6 = sld [smem:[#allocation0]]
  $region69: #{tpu_custom_call.1} parent=0
    _
  %s8 = ssub.s32 1, %s6
  %s9 = scalar_select 0, %s8, %s6
  $region1: #{tpu_custom_call.1} parent=0
    #allocation3 [shape = 'u8[8192]{0}', space=vmem, size = 0x2000, scoped, tag = 'input window, operand 0']
    #allocation4 [shape = 's32[2]{0}', space=sflag, size = 0x8, scoped, tag = 'scoped memory for tpu_custom_call.1']
    #allocation5 [shape = 's32[2]{0}', space=sflag, size = 0x8, scoped, tag = 'scoped memory for tpu_custom_call.1']
    #allocation6 [shape = 'u8[8192]{0}', space=vmem, size = 0x2000, scoped, tag = 'input window, operand 1, single buffered']
    #allocation7 [shape = 's32[1]{0}', space=sflag, size = 0x4, scoped, tag = 'scoped memory for tpu_custom_call.1']
    #allocation8 [shape = 'u8[8192]{0}', space=vmem, size = 0x2000, scoped, tag = 'input window, operand 3, single buffered']
    #allocation9 [shape = 'u8[2048]{0}', space=vmem, size = 0x800, scoped, tag = 'input window, operand 4, single buffered']
    #allocation10 [shape = 's32[1]{0}', space=sflag, size = 0x4, scoped, tag = 'scoped memory for tpu_custom_call.1']
    #allocation11 [shape = 'u8[8192]{0}', space=vmem, size = 0x2000, scoped, tag = 'output window, operand 0']
    %10 = vsyncpa [#allocation4], 0
    %s11 = scalar_lea.sflag [#allocation4], 1
    %12 = vsyncpa %s11, 0
    %13 = vsyncpa [#allocation7], 0
    %14 = vsyncpa [#allocation10], 0
    %15 = vsyncpa [#allocation5], 0
    %s16 = scalar_lea.sflag [#allocation5], 1
    %17 = vsyncpa %s16, 0
    loop: start=0, step=1, limit=4
    $region2: #{tpu_custom_call.1} parent=1 // loop_pre_header
      _
    $region3: #{tpu_custom_call.1} parent=1 // loop_header
      %s19 = sphi 0, %s23
      %p20 = scmp.ge.s32.totalorder %s19, 4
      %s29 = sphi 0, %s31
      %s32 = sphi 0, %s29
      %s33 = sphi 0, %s32
      %s49 = sphi 0, %s33
      %s53 = sphi 0, %s53
      %s55 = sphi 0, %s53
      %s56 = sphi 0, %s55
      %s70 = sphi 0, %s56
      %s74 = sphi 0, %s74
      %s76 = sphi 0, %s74
      %s77 = sphi 0, %s76
      %s91 = sphi 0, %s77
      %s95 = sphi 0, %s95
      %s97 = sphi 0, %s95
      %s98 = sphi 0, %s97
      %s112 = sphi 0, %s98
      %s116 = sphi 0, %s116
      %s118 = sphi 0, %s116
      %s119 = sphi 0, %s118
      %s133 = sphi 0, %s119
      %s139 = sphi 0, %s141
      %s142 = sphi 0, %s139
      %s143 = sphi 0, %s142
      %s159 = sphi 0, %s143
    $region4: #{tpu_custom_call.1} parent=1 // loop_header_branch
      %22 = sbr.rel (%p20) target = $region8
    $region5: #{tpu_custom_call.1} parent=1 // loop_body
      %s24 = ssub.s32 %s19, 1
      %s25 = ssub.s32 %s19, 2
      %s26 = sadd.s32 %s19, 1
      %s27 = ssub.s32 %s19, %s26
      %p28 = scmp.eq.s32.totalorder %s27, 0
      %s30 = sadd.s32 %s29, 1
      %s31 = scalar_select %p28, %s29, %s30
      %p34 = pneg %p28
      %p35 = scmp.eq.s32.totalorder %s19, 1
      %p36 = por %p34, %p35
      %p37 = scmp.ne.s32.totalorder %s29, %s32
      %p38 = scmp.eq.s32.totalorder %s19, 0
      %p39 = por %p37, %p38
      %p40 = scmp.ne.s32.totalorder %s29, %s32
      %p41 = scmp.eq.s32.totalorder %s24, 1
      %p42 = por %p40, %p41
      %p43 = scmp.ne.s32.totalorder %s32, %s33
      %p44 = scmp.eq.s32.totalorder %s24, 0
      %p45 = por %p43, %p44
      %p46 = scmp.ne.s32.totalorder %s32, %s33
      %p47 = scmp.eq.s32.totalorder %s25, 1
      %p48 = por %p46, %p47
      %p50 = scmp.ne.s32.totalorder %s33, %s49
      %p51 = scmp.eq.s32.totalorder %s25, 0
      %p52 = por %p50, %p51
      %s54 = sadd.s32 %s53, 1
      %p57 = scmp.eq.s32.totalorder %s19, 1
      %p58 = scmp.ne.s32.totalorder %s53, %s55
      %p59 = scmp.eq.s32.totalorder %s19, 0
      %p60 = por %p58, %p59
      %p61 = scmp.ne.s32.totalorder %s53, %s55
      %p62 = scmp.eq.s32.totalorder %s24, 1
      %p63 = por %p61, %p62
      %p64 = scmp.ne.s32.totalorder %s55, %s56
      %p65 = scmp.eq.s32.totalorder %s24, 0
      %p66 = por %p64, %p65
      %p67 = scmp.ne.s32.totalorder %s55, %s56
      %p68 = scmp.eq.s32.totalorder %s25, 1
      %p69 = por %p67, %p68
      %p71 = scmp.ne.s32.totalorder %s56, %s70
      %p72 = scmp.eq.s32.totalorder %s25, 0
      %p73 = por %p71, %p72
      %s75 = sadd.s32 %s74, 1
      %p78 = scmp.eq.s32.totalorder %s19, 1
      %p79 = scmp.ne.s32.totalorder %s74, %s76
      %p80 = scmp.eq.s32.totalorder %s19, 0
      %p81 = por %p79, %p80
      %p82 = scmp.ne.s32.totalorder %s74, %s76
      %p83 = scmp.eq.s32.totalorder %s24, 1
      %p84 = por %p82, %p83
      %p85 = scmp.ne.s32.totalorder %s76, %s77
      %p86 = scmp.eq.s32.totalorder %s24, 0
      %p87 = por %p85, %p86
      %p88 = scmp.ne.s32.totalorder %s76, %s77
      %p89 = scmp.eq.s32.totalorder %s25, 1
      %p90 = por %p88, %p89
      %p92 = scmp.ne.s32.totalorder %s77, %s91
      %p93 = scmp.eq.s32.totalorder %s25, 0
      %p94 = por %p92, %p93
      %s96 = sadd.s32 %s95, 1
      %p99 = scmp.eq.s32.totalorder %s19, 1
      %p100 = scmp.ne.s32.totalorder %s95, %s97
      %p101 = scmp.eq.s32.totalorder %s19, 0
      %p102 = por %p100, %p101
      %p103 = scmp.ne.s32.totalorder %s95, %s97
      %p104 = scmp.eq.s32.totalorder %s24, 1
      %p105 = por %p103, %p104
      %p106 = scmp.ne.s32.totalorder %s97, %s98
      %p107 = scmp.eq.s32.totalorder %s24, 0
      %p108 = por %p106, %p107
      %p109 = scmp.ne.s32.totalorder %s97, %s98
      %p110 = scmp.eq.s32.totalorder %s25, 1
      %p111 = por %p109, %p110
      %p113 = scmp.ne.s32.totalorder %s98, %s112
      %p114 = scmp.eq.s32.totalorder %s25, 0
      %p115 = por %p113, %p114
      %s117 = sadd.s32 %s116, 1
      %p120 = scmp.eq.s32.totalorder %s19, 1
      %p121 = scmp.ne.s32.totalorder %s116, %s118
      %p122 = scmp.eq.s32.totalorder %s19, 0
      %p123 = por %p121, %p122
      %p124 = scmp.ne.s32.totalorder %s116, %s118
      %p125 = scmp.eq.s32.totalorder %s24, 1
      %p126 = por %p124, %p125
      %p127 = scmp.ne.s32.totalorder %s118, %s119
      %p128 = scmp.eq.s32.totalorder %s24, 0
      %p129 = por %p127, %p128
      %p130 = scmp.ne.s32.totalorder %s118, %s119
      %p131 = scmp.eq.s32.totalorder %s25, 1
      %p132 = por %p130, %p131
      %p134 = scmp.ne.s32.totalorder %s119, %s133
      %p135 = scmp.eq.s32.totalorder %s25, 0
      %p136 = por %p134, %p135
      %s137 = ssub.s32 %s19, %s26
      %p138 = scmp.eq.s32.totalorder %s137, 0
      %s140 = sadd.s32 %s139, 1
      %s141 = scalar_select %p138, %s139, %s140
      %p144 = pneg %p138
      %p145 = scmp.eq.s32.totalorder %s19, 1
      %p146 = por %p144, %p145
      %p147 = scmp.ne.s32.totalorder %s139, %s142
      %p148 = scmp.eq.s32.totalorder %s19, 0
      %p149 = por %p147, %p148
      %p150 = scmp.ne.s32.totalorder %s139, %s142
      %p151 = scmp.eq.s32.totalorder %s24, 1
      %p152 = por %p150, %p151
      %p153 = scmp.ne.s32.totalorder %s142, %s143
      %p154 = scmp.eq.s32.totalorder %s24, 0
      %p155 = por %p153, %p154
      %p156 = scmp.ne.s32.totalorder %s142, %s143
      %p157 = scmp.eq.s32.totalorder %s25, 1
      %p158 = por %p156, %p157
      %p160 = scmp.ne.s32.totalorder %s143, %s159
      %p161 = scmp.eq.s32.totalorder %s25, 0
      %p162 = por %p160, %p161
      %p163 = scmp.le.s32.totalorder 1, %s19
      %p164 = scmp.lt.s32.totalorder %s19, 3
      %p165 = pnand %p163, %p164
      %p166 = pneg %p165
      // Predicated region
      $region9: #{tpu_custom_call.1} parent=5 // pred_check
        _
      $region10: #{tpu_custom_call.1} parent=5 // pred_check_branch
        %168 = sbr.rel (%p165) target = $region12
      $region11: #{tpu_custom_call.1} parent=5 // pred_region
        %s169 = ssub.s32 %s19, 1
        // Predicated region
        $region13: #{tpu_custom_call.1} parent=11 // pred_check
          %p170 = pneg %p66
        $region14: #{tpu_custom_call.1} parent=11 // pred_check_branch
          %172 = sbr.rel (%p170) target = $region16
        $region15: #{tpu_custom_call.1} parent=11 // pred_region
          %174 = vsyncadd [#allocation7], 0
          %s175 = sshll.u32 %s1, 4
          %s176 = int_to_ptr.hbm [resolvable:$true] %s175
          %s177 = sshll.u32 [#allocation6], 4
          %s178 = int_to_ptr.vmem [resolvable:$true] %s177
          %183 = dma.hbm_to_vmem [thread:$0]  %s176, 256, %s178, [#allocation7], 64, 64, 4
        $region16: #{tpu_custom_call.1} parent=11 // pred_fallthru
          _
        // Predicated region
        $region17: #{tpu_custom_call.1} parent=11 // pred_check
          %p184 = pneg %p87
        $region18: #{tpu_custom_call.1} parent=11 // pred_check_branch
          %186 = sbr.rel (%p184) target = $region20
        $region19: #{tpu_custom_call.1} parent=11 // pred_region
          _
        $region20: #{tpu_custom_call.1} parent=11 // pred_fallthru
          _
        // Predicated region
        $region21: #{tpu_custom_call.1} parent=11 // pred_check
          %p187 = pneg %p108
        $region22: #{tpu_custom_call.1} parent=11 // pred_check_branch
          %189 = sbr.rel (%p187) target = $region24
        $region23: #{tpu_custom_call.1} parent=11 // pred_region
          %191 = vsyncadd [#allocation7], 0
          %s192 = sshll.u32 %s3, 4
          %s193 = int_to_ptr.hbm [resolvable:$true] %s192
          %s194 = sshll.u32 [#allocation8], 4
          %s195 = int_to_ptr.vmem [resolvable:$true] %s194
          %200 = dma.hbm_to_vmem [thread:$0]  %s193, 256, %s195, [#allocation7], 64, 64, 4
        $region24: #{tpu_custom_call.1} parent=11 // pred_fallthru
          _
        // Predicated region
        $region25: #{tpu_custom_call.1} parent=11 // pred_check
          %p201 = pneg %p129
        $region26: #{tpu_custom_call.1} parent=11 // pred_check_branch
          %203 = sbr.rel (%p201) target = $region28
        $region27: #{tpu_custom_call.1} parent=11 // pred_region
          %205 = vsyncadd [#allocation10], 0
          %s207 = sshll.u32 %s4, 4
          %s208 = int_to_ptr.hbm [resolvable:$true] %s207
          %s209 = sshll.u32 [#allocation9], 4
          %s210 = int_to_ptr.vmem [resolvable:$true] %s209
          %212 = dma.hbm_to_vmem [thread:$0]  %s208, 64, %s210, [#allocation10]
        $region28: #{tpu_custom_call.1} parent=11 // pred_fallthru
          _
      $region12: #{tpu_custom_call.1} parent=5 // pred_fallthru
        _
      %p213 = scmp.lt.s32.totalorder %s19, 2
      // Predicated region
      $region29: #{tpu_custom_call.1} parent=5 // pred_check
        %p214 = pneg %p213
      $region30: #{tpu_custom_call.1} parent=5 // pred_check_branch
        %216 = sbr.rel (%p214) target = $region32
      $region31: #{tpu_custom_call.1} parent=5 // pred_region
        // Predicated region
        $region33: #{tpu_custom_call.1} parent=31 // pred_check
          %p217 = pneg %p39
        $region34: #{tpu_custom_call.1} parent=31 // pred_check_branch
          %219 = sbr.rel (%p217) target = $region36
        $region35: #{tpu_custom_call.1} parent=31 // pred_region
          %s220 = sand.u32 %s29, 1
          %s221 = scalar_lea.sflag [#allocation4], %s220
          %s222 = sand.u32 %s29, 1
          %s223 = smul.addr %s222, 8
          %s224 = scalar_lea.vmem [#allocation3], %s223
          %226 = vsyncadd %s221, 0
          %s227 = smul.addr %s19, 8
          %s228 = scalar_lea.hbm %s0, %s227
          %s230 = sshll.u32 %s228, 4
          %s231 = int_to_ptr.hbm [resolvable:$true] %s230
          %s232 = sshll.u32 %s224, 4
          %s233 = int_to_ptr.vmem [resolvable:$true] %s232
          %235 = dma.hbm_to_vmem [thread:$0]  %s231, 128, %s233, %s221
        $region36: #{tpu_custom_call.1} parent=31 // pred_fallthru
          _
      $region32: #{tpu_custom_call.1} parent=5 // pred_fallthru
        _
      %p236 = scmp.le.s32.totalorder 1, %s19
      %p237 = scmp.lt.s32.totalorder %s19, 3
      %p238 = pnand %p236, %p237
      %p239 = pneg %p238
      // Predicated region
      $region37: #{tpu_custom_call.1} parent=5 // pred_check
        _
      $region38: #{tpu_custom_call.1} parent=5 // pred_check_branch
        %241 = sbr.rel (%p238) target = $region40
      $region39: #{tpu_custom_call.1} parent=5 // pred_region
        %s242 = ssub.s32 %s19, 1
        %s243 = sand.u32 %s32, 1
        %s244 = scalar_lea.sflag [#allocation4], %s243
        %s245 = sand.u32 %s32, 1
        %s246 = smul.addr %s245, 8
        %s247 = scalar_lea.vmem [#allocation3], %s246
        // Predicated region
        $region41: #{tpu_custom_call.1} parent=39 // pred_check
          %p248 = pneg %p45
        $region42: #{tpu_custom_call.1} parent=39 // pred_check_branch
          %250 = sbr.rel (%p248) target = $region44
        $region43: #{tpu_custom_call.1} parent=39 // pred_region
          %252 = dma.done %s244, 128
        $region44: #{tpu_custom_call.1} parent=39 // pred_fallthru
          _
        // Predicated region
        $region45: #{tpu_custom_call.1} parent=39 // pred_check
          %p253 = pneg %p66
        $region46: #{tpu_custom_call.1} parent=39 // pred_check_branch
          %255 = sbr.rel (%p253) target = $region48
        $region47: #{tpu_custom_call.1} parent=39 // pred_region
          %257 = dma.done [#allocation7], 256
        $region48: #{tpu_custom_call.1} parent=39 // pred_fallthru
          _
        // Predicated region
        $region49: #{tpu_custom_call.1} parent=39 // pred_check
          %p258 = pneg %p108
        $region50: #{tpu_custom_call.1} parent=39 // pred_check_branch
          %260 = sbr.rel (%p258) target = $region52
        $region51: #{tpu_custom_call.1} parent=39 // pred_region
          %262 = dma.done [#allocation7], 256
        $region52: #{tpu_custom_call.1} parent=39 // pred_fallthru
          _
        // Predicated region
        $region53: #{tpu_custom_call.1} parent=39 // pred_check
          %p263 = pneg %p129
        $region54: #{tpu_custom_call.1} parent=39 // pred_check_branch
          %265 = sbr.rel (%p263) target = $region56
        $region55: #{tpu_custom_call.1} parent=39 // pred_region
          %267 = dma.done [#allocation10], 64
        $region56: #{tpu_custom_call.1} parent=39 // pred_fallthru
          _
        %s268 = sand.u32 %s32, 1
        %s269 = scalar_lea.sflag [#allocation4], %s268
        %s270 = sand.u32 %s32, 1
        %s271 = smul.addr %s270, 8
        %s272 = scalar_lea.vmem [#allocation3], %s271
        %p273 = pneg %p45
        %p274 = pneg %p42
        %p275 = pneg %p66
        %p276 = pneg %p63
        %p277 = pneg %p87
        %p278 = pneg %p84
        %p279 = pneg %p108
        %p280 = pneg %p105
        %p281 = pneg %p129
        %p282 = pneg %p126
        %p283 = pneg %p155
        %p284 = pneg %p152
        %s285 = sand.u32 %s142, 1
        %s286 = scalar_lea.sflag [#allocation5], %s285
        %s287 = sand.u32 %s142, 1
        %s288 = smul.addr %s287, 8
        %s289 = scalar_lea.vmem [#allocation11], %s288
        %v291 = vld [vmem:[#allocation9] sm:$0x7]
        %v292 = vld [vmem:[%s247] sm:$0xff]
        %vm293 = vcmask 261120
        %v294 = vsel %vm293, %v292, 0.0
        %295 = vadd.xlane.f32.xlu0 %v294
        %v296 = vpop.xlane.xlu0 %295
        %v297 = vrcp.pop 32.0
        %v298 = vmul.f32 32.0, %v297
        %v299 = vsub.f32 1.0, %v298
        %v300 = vmul.f32 %v297, %v299
        %v301 = vadd.f32 %v297, %v300
        %vm302 = vweird.f32 %v297
        %v303 = vsel %vm302, %v297, %v301
        %v304 = vmul.f32 %v296, %v303
        %v305 = vsub.f32 %v292, %v304
        %v306 = vmul.f32 %v305, %v305
        %v307 = vsel %vm293, %v306, 0.0
        %308 = vadd.xlane.f32.xlu0 %v307
        %v309 = vpop.xlane.xlu0 %308
        %v310 = vmul.f32 %v309, %v303
        %v311 = vadd.f32 %v310, 1e-05
        %v312 = vrsqrt.pop %v311
        %v313 = vmul.f32 %v312, %v311
        %v314 = vmul.f32 %v313, %v312
        %v315 = vmul.f32 0.5, %v314
        %v316 = vsub.f32 1.5, %v315
        %v317 = vmul.f32 %v312, %v316
        %vm318 = vweird.f32 %v311
        %vm319 = vweird.f32 %v312
        %vm320 = vmor %vm318, %vm319
        %v321 = vsel %vm320, %v312, %v317
        %v322 = vmul.f32 %v305, %v321
        %v323 = vperm.slane %v291, 0
        %v324 = vmul.f32 %v322, %v323
        %v325 = vperm.slane %v291, 1
        %v326 = vadd.f32 %v324, %v325
        %v327 = vpack.c.bf16 %v326, %v326
        %v328 = vld [vmem:[#allocation6] sm:$0xf]
        %v329 = vld [vmem:[#allocation6 + $0x4] sm:$0xf]
        %v330 = vld [vmem:[#allocation6 + $0x8] sm:$0xf]
        %v331 = vld [vmem:[#allocation6 + $0xc] sm:$0xf]
        %v332 = vld [vmem:[%s2] sm:$0x1]
        %v334 = vperm.slane %v332, 0
        %v340 = vunpack.c.l.b16 %v328
        %v341 = vunpack.c.l.b16 %v329
        %v342 = vunpack.c.l.b16 %v330
        %v343 = vunpack.c.l.b16 %v331
        %v344 = vpack.c.b16 %v341, %v340
        %v345 = vpack.c.b16 %v343, %v342
        %v349 = vsel %vm293, %v327, 0
        %351 = vmatpush.bf16.msra.mxu0 0
        %352 = vmatpush.bf16.msra.mxu0 0
        %353 = vmatpush.bf16.msra.mxu0 0
        %354 = vmatpush.bf16.msra.mxu0 0
        %355 = vmatpush.bf16.msra.mxu0 0
        %356 = vmatpush.bf16.msra.mxu0 0
        %357 = vmatpush.bf16.msra.mxu0 %v345
        %358 = vmatpush.bf16.msra.mxu0 %v344
        %359 = vmatmul.bf16.gmra.mxu0 %v349
        %v360 = vpop.f32.mrf.mxu0
        %v361 = vadd.f32 %v334, %v360
        %v362 = vpop.f32.mrf.mxu0
        %363 = vdwg.mxu0
        %v364 = vpack.c.bf16 %v361, %v361
        %vm365 = vcmask 781312
        %366 = vst.msk [vmem:[#allocation2] sm:$0xf] %vm365, %v364
        %v367 = vld [vmem:[#allocation8] sm:$0xf]
        %v368 = vld [vmem:[#allocation8 + $0x4] sm:$0xf]
        %v369 = vld [vmem:[#allocation8 + $0x8] sm:$0xf]
        %v370 = vld [vmem:[#allocation8 + $0xc] sm:$0xf]
        %v371 = vld [vmem:[#allocation2] sm:$0xf]
        %v373 = vunpack.c.l.b16 %v371
        %v374 = vpack.c.b16 %v373, %v373
        %375 = vrot.lane.b32.xlu0 %v374, 96
        %v376 = vpop.permute.xlu0 %375
        %vm377 = vcmask 64512
        %v379 = vsel %vm377, %v371, 0
        %v382 = vsel %vm377, %v376, 0
        %384 = vmatpush.bf16.xpose.msra.mxu0 0
        %385 = vmatpush.bf16.xpose.msra.mxu0 0
        %386 = vmatpush.bf16.xpose.msra.mxu0 0
        %387 = vmatpush.bf16.xpose.msra.mxu0 0
        %388 = vmatpush.bf16.xpose.msra.mxu0 0
        %389 = vmatpush.bf16.xpose.msra.mxu0 0
        %390 = vmatpush.bf16.xpose.msra.mxu0 0
        %391 = vmatpush.bf16.xpose.msra.mxu0 %v382
        %392 = vmatmul.bf16.gmra.mxu0 %v379
        %v393 = vpop.f32.mrf.mxu0
        %v394 = vadd.f32 0.0, %v393
        %v395 = vpop.f32.mrf.mxu0
        %396 = vdwg.mxu0
        %v397 = vsel %vm377, %v394, -inf
        %398 = vmax.xlane.f32.xlu0 %v397
        %v399 = vpop.xlane.xlu0 %398
        %v400 = vsub.f32 %v394, %v399
        %v401 = vmul.f32 %v400, 1.442695
        %v402 = vpow.pop %v401
        %v403 = vsel %vm377, %v402, 0.0
        %404 = vadd.xlane.f32.xlu0 %v403
        %v405 = vpop.xlane.xlu0 %404
        %v406 = vrcp.pop %v405
        %v407 = vmul.f32 %v402, %v406
        %v408 = vpack.c.bf16 %v407, %v407
        %409 = vrot.lane.b32.xlu0 %v374, 64
        %v410 = vpop.permute.xlu0 %409
        %v412 = vsel %vm377, %v408, 0
        %vm414 = vcmask 1043456
        %v416 = vsel %vm414, %v410, 0
        %418 = vmatpush.bf16.msra.mxu0 0
        %419 = vmatpush.bf16.msra.mxu0 0
        %420 = vmatpush.bf16.msra.mxu0 0
        %421 = vmatpush.bf16.msra.mxu0 0
        %422 = vmatpush.bf16.msra.mxu0 0
        %423 = vmatpush.bf16.msra.mxu0 0
        %424 = vmatpush.bf16.msra.mxu0 0
        %425 = vmatpush.bf16.msra.mxu0 %v416
        %426 = vmatmul.bf16.gmra.mxu0 %v412
        %v427 = vpop.f32.mrf.mxu0
        %v428 = vadd.f32 0.0, %v427
        %v429 = vpop.f32.mrf.mxu0
        %430 = vdwg.mxu0
        %v431 = vpack.c.bf16 %v428, %v428
        %432 = vrot.lane.b32.xlu0 %v374, 120
        %v433 = vpop.permute.xlu0 %432
        %434 = vrot.lane.b32.xlu0 %v374, 88
        %v435 = vpop.permute.xlu0 %434
        %v437 = vsel %vm377, %v433, 0
        %v440 = vsel %vm377, %v435, 0
        %442 = vmatpush.bf16.xpose.msra.mxu0 0
        %443 = vmatpush.bf16.xpose.msra.mxu0 0
        %444 = vmatpush.bf16.xpose.msra.mxu0 0
        %445 = vmatpush.bf16.xpose.msra.mxu0 0
        %446 = vmatpush.bf16.xpose.msra.mxu0 0
        %447 = vmatpush.bf16.xpose.msra.mxu0 0
        %448 = vmatpush.bf16.xpose.msra.mxu0 0
        %449 = vmatpush.bf16.xpose.msra.mxu0 %v440
        %450 = vmatmul.bf16.gmra.mxu0 %v437
        %v451 = vpop.f32.mrf.mxu0
        %v452 = vadd.f32 0.0, %v451
        %v453 = vpop.f32.mrf.mxu0
        %454 = vdwg.mxu0
        %v455 = vsel %vm377, %v452, -inf
        %456 = vmax.xlane.f32.xlu0 %v455
        %v457 = vpop.xlane.xlu0 %456
        %v458 = vsub.f32 %v452, %v457
        %v459 = vmul.f32 %v458, 1.442695
        %v460 = vpow.pop %v459
        %v461 = vsel %vm377, %v460, 0.0
        %462 = vadd.xlane.f32.xlu0 %v461
        %v463 = vpop.xlane.xlu0 %462
        %v464 = vrcp.pop %v463
        %v465 = vmul.f32 %v460, %v464
        %v466 = vpack.c.bf16 %v465, %v465
        %467 = vrot.lane.b32.xlu0 %v374, 56
        %v468 = vpop.permute.xlu0 %467
        %v470 = vsel %vm377, %v466, 0
        %v473 = vsel %vm414, %v468, 0
        %475 = vmatpush.bf16.msra.mxu0 0
        %476 = vmatpush.bf16.msra.mxu0 0
        %477 = vmatpush.bf16.msra.mxu0 0
        %478 = vmatpush.bf16.msra.mxu0 0
        %479 = vmatpush.bf16.msra.mxu0 0
        %480 = vmatpush.bf16.msra.mxu0 0
        %481 = vmatpush.bf16.msra.mxu0 0
        %482 = vmatpush.bf16.msra.mxu0 %v473
        %483 = vmatmul.bf16.gmra.mxu0 %v470
        %v484 = vpop.f32.mrf.mxu0
        %v485 = vadd.f32 0.0, %v484
        %v486 = vpop.f32.mrf.mxu0
        %487 = vdwg.mxu0
        %v488 = vpack.c.bf16 %v485, %v485
        %v490 = vsel %vm377, %v488, 0
        %v493 = vsel %vm414, %v368, 0
        %495 = vmatpush.bf16.msra.mxu0 0
        %496 = vmatpush.bf16.msra.mxu0 0
        %497 = vmatpush.bf16.msra.mxu0 0
        %498 = vmatpush.bf16.msra.mxu0 0
        %499 = vmatpush.bf16.msra.mxu0 0
        %500 = vmatpush.bf16.msra.mxu0 0
        %501 = vmatpush.bf16.msra.mxu0 0
        %502 = vmatpush.bf16.msra.mxu0 %v493
        %503 = vmatmul.bf16.gmra.mxu0 %v490
        %v504 = vpop.f32.mrf.mxu0
        %v505 = vadd.f32 0.0, %v504
        %v506 = vpop.f32.mrf.mxu0
        %507 = vdwg.mxu0
        %v509 = vsel %vm377, %v431, 0
        %v512 = vsel %vm414, %v367, 0
        %514 = vmatpush.bf16.msra.mxu0 0
        %515 = vmatpush.bf16.msra.mxu0 0
        %516 = vmatpush.bf16.msra.mxu0 0
        %517 = vmatpush.bf16.msra.mxu0 0
        %518 = vmatpush.bf16.msra.mxu0 0
        %519 = vmatpush.bf16.msra.mxu0 0
        %520 = vmatpush.bf16.msra.mxu0 0
        %521 = vmatpush.bf16.msra.mxu0 %v512
        %522 = vmatmul.bf16.gmra.mxu0 %v509
        %v523 = vpop.f32.mrf.mxu0
        %v524 = vadd.f32 %v505, %v523
        %v525 = vpop.f32.mrf.mxu0
        %526 = vdwg.mxu0
        %527 = vrot.lane.b32.xlu0 %v374, 112
        %v528 = vpop.permute.xlu0 %527
        %529 = vrot.lane.b32.xlu0 %v374, 80
        %v530 = vpop.permute.xlu0 %529
        %v532 = vsel %vm377, %v528, 0
        %v535 = vsel %vm377, %v530, 0
        %537 = vmatpush.bf16.xpose.msra.mxu0 0
        %538 = vmatpush.bf16.xpose.msra.mxu0 0
        %539 = vmatpush.bf16.xpose.msra.mxu0 0
        %540 = vmatpush.bf16.xpose.msra.mxu0 0
        %541 = vmatpush.bf16.xpose.msra.mxu0 0
        %542 = vmatpush.bf16.xpose.msra.mxu0 0
        %543 = vmatpush.bf16.xpose.msra.mxu0 0
        %544 = vmatpush.bf16.xpose.msra.mxu0 %v535
        %545 = vmatmul.bf16.gmra.mxu0 %v532
        %v546 = vpop.f32.mrf.mxu0
        %v547 = vadd.f32 0.0, %v546
        %v548 = vpop.f32.mrf.mxu0
        %549 = vdwg.mxu0
        %v550 = vsel %vm377, %v547, -inf
        %551 = vmax.xlane.f32.xlu0 %v550
        %v552 = vpop.xlane.xlu0 %551
        %v553 = vsub.f32 %v547, %v552
        %v554 = vmul.f32 %v553, 1.442695
        %v555 = vpow.pop %v554
        %v556 = vsel %vm377, %v555, 0.0
        %557 = vadd.xlane.f32.xlu0 %v556
        %v558 = vpop.xlane.xlu0 %557
        %v559 = vrcp.pop %v558
        %v560 = vmul.f32 %v555, %v559
        %v561 = vpack.c.bf16 %v560, %v560
        %562 = vrot.lane.b32.xlu0 %v374, 48
        %v563 = vpop.permute.xlu0 %562
        %v565 = vsel %vm377, %v561, 0
        %v568 = vsel %vm414, %v563, 0
        %570 = vmatpush.bf16.msra.mxu0 0
        %571 = vmatpush.bf16.msra.mxu0 0
        %572 = vmatpush.bf16.msra.mxu0 0
        %573 = vmatpush.bf16.msra.mxu0 0
        %574 = vmatpush.bf16.msra.mxu0 0
        %575 = vmatpush.bf16.msra.mxu0 0
        %576 = vmatpush.bf16.msra.mxu0 0
        %577 = vmatpush.bf16.msra.mxu0 %v568
        %578 = vmatmul.bf16.gmra.mxu0 %v565
        %v579 = vpop.f32.mrf.mxu0
        %v580 = vadd.f32 0.0, %v579
        %v581 = vpop.f32.mrf.mxu0
        %582 = vdwg.mxu0
        %v583 = vpack.c.bf16 %v580, %v580
        %v585 = vsel %vm377, %v583, 0
        %v588 = vsel %vm414, %v369, 0
        %590 = vmatpush.bf16.msra.mxu0 0
        %591 = vmatpush.bf16.msra.mxu0 0
        %592 = vmatpush.bf16.msra.mxu0 0
        %593 = vmatpush.bf16.msra.mxu0 0
        %594 = vmatpush.bf16.msra.mxu0 0
        %595 = vmatpush.bf16.msra.mxu0 0
        %596 = vmatpush.bf16.msra.mxu0 0
        %597 = vmatpush.bf16.msra.mxu0 %v588
        %598 = vmatmul.bf16.gmra.mxu0 %v585
        %v599 = vpop.f32.mrf.mxu0
        %v600 = vadd.f32 0.0, %v599
        %v601 = vpop.f32.mrf.mxu0
        %602 = vdwg.mxu0
        %v603 = vadd.f32 %v524, %v600
        %604 = vrot.lane.b32.xlu0 %v374, 104
        %v605 = vpop.permute.xlu0 %604
        %606 = vrot.lane.b32.xlu0 %v374, 72
        %v607 = vpop.permute.xlu0 %606
        %v609 = vsel %vm377, %v605, 0
        %v612 = vsel %vm377, %v607, 0
        %614 = vmatpush.bf16.xpose.msra.mxu0 0
        %615 = vmatpush.bf16.xpose.msra.mxu0 0
        %616 = vmatpush.bf16.xpose.msra.mxu0 0
        %617 = vmatpush.bf16.xpose.msra.mxu0 0
        %618 = vmatpush.bf16.xpose.msra.mxu0 0
        %619 = vmatpush.bf16.xpose.msra.mxu0 0
        %620 = vmatpush.bf16.xpose.msra.mxu0 0
        %621 = vmatpush.bf16.xpose.msra.mxu0 %v612
        %622 = vmatmul.bf16.gmra.mxu0 %v609
        %v623 = vpop.f32.mrf.mxu0
        %v624 = vadd.f32 0.0, %v623
        %v625 = vpop.f32.mrf.mxu0
        %626 = vdwg.mxu0
        %v627 = vsel %vm377, %v624, -inf
        %628 = vmax.xlane.f32.xlu0 %v627
        %v629 = vpop.xlane.xlu0 %628
        %v630 = vsub.f32 %v624, %v629
        %v631 = vmul.f32 %v630, 1.442695
        %v632 = vpow.pop %v631
        %v633 = vsel %vm377, %v632, 0.0
        %634 = vadd.xlane.f32.xlu0 %v633
        %v635 = vpop.xlane.xlu0 %634
        %v636 = vrcp.pop %v635
        %v637 = vmul.f32 %v632, %v636
        %v638 = vpack.c.bf16 %v637, %v637
        %639 = vrot.lane.b32.xlu0 %v374, 40
        %v640 = vpop.permute.xlu0 %639
        %v642 = vsel %vm377, %v638, 0
        %v645 = vsel %vm414, %v640, 0
        %647 = vmatpush.bf16.msra.mxu0 0
        %648 = vmatpush.bf16.msra.mxu0 0
        %649 = vmatpush.bf16.msra.mxu0 0
        %650 = vmatpush.bf16.msra.mxu0 0
        %651 = vmatpush.bf16.msra.mxu0 0
        %652 = vmatpush.bf16.msra.mxu0 0
        %653 = vmatpush.bf16.msra.mxu0 0
        %654 = vmatpush.bf16.msra.mxu0 %v645
        %655 = vmatmul.bf16.gmra.mxu0 %v642
        %v656 = vpop.f32.mrf.mxu0
        %v657 = vadd.f32 0.0, %v656
        %v658 = vpop.f32.mrf.mxu0
        %659 = vdwg.mxu0
        %v660 = vpack.c.bf16 %v657, %v657
        %v662 = vsel %vm377, %v660, 0
        %v665 = vsel %vm414, %v370, 0
        %667 = vmatpush.bf16.msra.mxu0 0
        %668 = vmatpush.bf16.msra.mxu0 0
        %669 = vmatpush.bf16.msra.mxu0 0
        %670 = vmatpush.bf16.msra.mxu0 0
        %671 = vmatpush.bf16.msra.mxu0 0
        %672 = vmatpush.bf16.msra.mxu0 0
        %673 = vmatpush.bf16.msra.mxu0 0
        %674 = vmatpush.bf16.msra.mxu0 %v665
        %675 = vmatmul.bf16.gmra.mxu0 %v662
        %v676 = vpop.f32.mrf.mxu0
        %v677 = vadd.f32 0.0, %v676
        %v678 = vpop.f32.mrf.mxu0
        %679 = vdwg.mxu0
        %v680 = vadd.f32 %v603, %v677
        %v681 = vperm.slane %v291, 2
        %v682 = vadd.f32 %v680, %v681
        %683 = vst.msk [vmem:[%s289] sm:$0xff] %vm293, %v682
        %s684 = sand.u32 %s142, 1
        %s685 = scalar_lea.sflag [#allocation5], %s684
        %s686 = sand.u32 %s142, 1
        %s687 = smul.addr %s686, 8
        %s688 = scalar_lea.vmem [#allocation11], %s687
        // Predicated region
        $region57: #{tpu_custom_call.1} parent=39 // pred_check
          %p689 = pneg %p152
        $region58: #{tpu_custom_call.1} parent=39 // pred_check_branch
          %691 = sbr.rel (%p689) target = $region60
        $region59: #{tpu_custom_call.1} parent=39 // pred_region
          %693 = vsyncadd %s685, 0
          %s694 = smul.addr %s24, 8
          %s695 = scalar_lea.hbm %s5, %s694
          %s697 = sshll.u32 %s688, 4
          %s698 = int_to_ptr.vmem [resolvable:$true] %s697
          %s699 = sshll.u32 %s695, 4
          %s700 = int_to_ptr.hbm [resolvable:$true] %s699
          %702 = dma.vmem_to_hbm [thread:$0]  %s698, 128, %s700, %s685
        $region60: #{tpu_custom_call.1} parent=39 // pred_fallthru
          _
      $region40: #{tpu_custom_call.1} parent=5 // pred_fallthru
        _
      %p703 = scmp.le.s32.totalorder 2, %s19
      // Predicated region
      $region61: #{tpu_custom_call.1} parent=5 // pred_check
        %p704 = pneg %p703
      $region62: #{tpu_custom_call.1} parent=5 // pred_check_branch
        %706 = sbr.rel (%p704) target = $region64
      $region63: #{tpu_custom_call.1} parent=5 // pred_region
        %s707 = ssub.s32 %s19, 2
        // Predicated region
        $region65: #{tpu_custom_call.1} parent=63 // pred_check
          %p708 = pneg %p158
        $region66: #{tpu_custom_call.1} parent=63 // pred_check_branch
          %710 = sbr.rel (%p708) target = $region68
        $region67: #{tpu_custom_call.1} parent=63 // pred_region
          %s711 = sand.u32 %s143, 1
          %s712 = scalar_lea.sflag [#allocation5], %s711
          %s713 = sand.u32 %s143, 1
          %s714 = smul.addr %s713, 8
          %s715 = scalar_lea.vmem [#allocation11], %s714
          %717 = dma.done %s712, 128
        $region68: #{tpu_custom_call.1} parent=63 // pred_fallthru
          _
      $region64: #{tpu_custom_call.1} parent=5 // pred_fallthru
        _
    $region6: #{tpu_custom_call.1} parent=1 // loop_footer
      %s23 = sadd.s32 1, %s19
    $region7: #{tpu_custom_call.1} parent=1 // loop_footer_branch
      %18 = sbr.rel target = $region3
    $region8: #{tpu_custom_call.1} parent=1 // loop_exit
      _
    %718 = vsyncpa [#allocation4], 1
    %s719 = scalar_lea.sflag [#allocation4], 1
    %720 = vsyncpa %s719, 1
    %721 = vsyncpa [#allocation7], 1
    %722 = vsyncpa [#allocation10], 1
    %723 = vsyncpa [#allocation5], 1
    %s724 = scalar_lea.sflag [#allocation5], 1
    %725 = vsyncpa %s724, 1

</llo_original>
